<compile_context>
chip_gen: v6e
topology: v6e:2x2x1
jax: 0.10.0
libtpu: 0.0.40
codegen_flags: <defaults>
</compile_context>

<pallas_src>
import functools

import jax
import jax.numpy as jnp
from jax.experimental import pallas as pl
from jax.experimental.pallas import tpu as pltpu


def _soft_ce_kernel(pred_ref, tgt_ref, ce_ref, *, n_rows, bf16_exp):
    i = pl.program_id(0)
    tm = pred_ref.shape[0]

    x = pred_ref[...].astype(jnp.float32)                 # (TM, C)
    t = tgt_ref[...].astype(jnp.float32)                  # (TM, C)

    # Numerically stable logsumexp along the class (lane) axis.
    m = jnp.max(x, axis=-1, keepdims=True)                # (TM, 1)
    z = x - m
    if bf16_exp:
        # bf16 EUP path (v6e/v7x): ~2x exp throughput; accumulation stays f32.
        e = jnp.exp(z.astype(jnp.bfloat16)).astype(jnp.float32)
    else:
        e = jnp.exp(z)
    lse = jnp.log(jnp.sum(e, axis=-1, keepdims=True))     # (TM, 1)

    # ce = -sum_c t*(x - m - lse) = (m + lse)*sum_c t - sum_c t*x
    t_sum = jnp.sum(t, axis=-1, keepdims=True)            # (TM, 1)
    tx_sum = jnp.sum(t * x, axis=-1, keepdims=True)       # (TM, 1)
    ce = (m + lse) * t_sum - tx_sum                       # (TM, 1)

    # Mask tail rows: the last tile may extend past n_rows; those rows hold
    # arbitrary data (never bounds-checked) but the select below overrides the
    # whole row with 0.0 even if ce is Inf/NaN there.
    row = i * tm + jax.lax.broadcasted_iota(jnp.int32, (tm, 1), 0)
    ce_ref[...] = jnp.where(row < n_rows, ce, 0.0)


def _tpu_kind():
    try:
        return jax.devices()[0].device_kind.lower()
    except Exception:
        return ""


def soft_target_cross_entropy_loss(pred, target, reduction="mean", bf16_exp=None):
    """Pallas TPU implementation of SoftTargetCrossEntropyLoss.forward.

    pred, target: arrays of identical shape (..., C).
    reduction in {'mean', 'sum', 'none'}.
    bf16_exp: None = auto (bf16 inputs on non-v5e chips), or force True/False.
    """
    if reduction not in ("mean", "sum", "none"):
        raise ValueError(f"{reduction} is not a valid value for reduction")

    C = pred.shape[-1]
    pred2d = pred.reshape(-1, C)
    tgt2d = target.reshape(-1, C)
    n_rows = pred2d.shape[0]
    out_dtype = jnp.promote_types(pred.dtype, target.dtype)

    # --- Per-generation tuning knobs -------------------------------------
    kind = _tpu_kind()
    is_v5e = ("v5 lite" in kind) or ("v5e" in kind) or ("v5lite" in kind)
    is_v7 = "v7" in kind

    if is_v7:
        target_block_bytes = 4 * 2**20    # f32 working tile per input
        vmem_budget = 40 * 2**20          # whole-step working set (64 MiB phys)
        base_vmem_limit = 48 * 2**20
        vmem_cap = 56 * 2**20
    else:                                  # v5e / v6e / v5p: 128 MiB physical
        target_block_bytes = 6 * 2**20
        vmem_budget = 56 * 2**20
        base_vmem_limit = 64 * 2**20
        vmem_cap = 100 * 2**20

    isz_p = pred2d.dtype.itemsize
    isz_t = tgt2d.dtype.itemsize
    # Per-row VMEM cost of one grid step: 2 pipeline buffers for each input at
    # native width + ~4 tile-sized f32 temporaries (x, t, exp(x-m), t*x).
    bytes_per_row = C * (2 * isz_p + 2 * isz_t + 4 * 4)

    # Sublane packing of the narrowest input dtype (bf16 packs 2 rows/sublane).
    sub = {1: 32, 2: 16}.get(min(isz_p, isz_t), 8)

    MIN_STEPS = 8  # keep the "parallel" axis populated (megacore + pipelining)
    tile_rows = max(1, target_block_bytes // (4 * C))
    tile_rows = min(tile_rows, max(1, vmem_budget // bytes_per_row))
    tile_rows = min(tile_rows, pl.cdiv(n_rows, MIN_STEPS))
    tile_rows = min(tile_rows, n_rows)
    tile_rows = max(sub, ((tile_rows + sub - 1) // sub) * sub)

    num_tiles = pl.cdiv(n_rows, tile_rows)
    n_pad = num_tiles * tile_rows          # padded output rows

    # Raise the scoped-VMEM limit to cover the real footprint (with headroom),
    # capped well under each generation's physical VMEM.
    footprint = tile_rows * bytes_per_row + 2 * tile_rows * 4
    vmem_limit = int(min(vmem_cap, max(base_vmem_limit, footprint + 8 * 2**20)))

    if bf16_exp is None:
        bf16_exp = bool(pred2d.dtype == jnp.bfloat16 and not is_v5e)

    cost = pl.CostEstimate(
        flops=6 * n_pad * C,
        transcendentals=n_pad * C,
        bytes_accessed=n_pad * C * (isz_p + isz_t) + n_pad * 4,
    )

    kernel = functools.partial(_soft_ce_kernel, n_rows=n_rows,
                               bf16_exp=bool(bf16_exp))

    ce = pl.pallas_call(
        kernel,
        out_shape=jax.ShapeDtypeStruct((n_pad, 1), jnp.float32),
        grid_spec=pltpu.PrefetchScalarGridSpec(
            num_scalar_prefetch=0,
            grid=(num_tiles,),
            in_specs=[
                pl.BlockSpec((tile_rows, C), lambda i: (i, 0)),
                pl.BlockSpec((tile_rows, C), lambda i: (i, 0)),
            ],
            out_specs=pl.BlockSpec((tile_rows, 1), lambda i: (i, 0)),
        ),
        compiler_params=pltpu.CompilerParams(
            dimension_semantics=("parallel",),   # no cross-step state
            vmem_limit_bytes=vmem_limit,
        ),
        cost_estimate=cost,
    )(pred2d, tgt2d)

    ce_rows = ce[:n_rows, 0]
    if reduction == "mean":
        return (jnp.sum(ce_rows) / jnp.float32(n_rows)).astype(out_dtype)
    if reduction == "sum":
        return jnp.sum(ce_rows).astype(out_dtype)
    return ce_rows.reshape(pred.shape[:-1]).astype(out_dtype)


def _reference(pred, target, reduction="mean"):
    x = pred.astype(jnp.float32)
    t = target.astype(jnp.float32)
    log_sm = jax.nn.log_softmax(x, axis=-1)
    ce = jnp.sum(-t * log_sm, axis=-1)
    if reduction == "mean":
        return jnp.mean(ce)
    if reduction == "sum":
        return jnp.sum(ce)
    return ce


if __name__ == "__main__":
    key = jax.random.PRNGKey(0)

    # Case 1: (batch, seq, classes) f32, multi-tile grid (tile_rows caps at
    # cdiv(16, 8) -> 8 rows -> 2 grid steps).
    batch, seq, classes = 2, 8, 32
    k1, k2, k3, k4 = jax.random.split(key, 4)
    pred = jax.random.normal(k1, (batch, seq, classes), dtype=jnp.float32)
    target = jax.nn.softmax(
        jax.random.normal(k2, (batch, seq, classes), dtype=jnp.float32), axis=-1
    )

    loss = jax.block_until_ready(soft_target_cross_entropy_loss(pred, target, "mean"))
    ref = _reference(pred, target, "mean")
    assert jnp.allclose(loss, ref, rtol=1e-5, atol=1e-5), (loss, ref)

    loss_sum = jax.block_until_ready(soft_target_cross_entropy_loss(pred, target, "sum"))
    ref_sum = _reference(pred, target, "sum")
    assert jnp.allclose(loss_sum, ref_sum, rtol=1e-5, atol=1e-5), (loss_sum, ref_sum)

    loss_none = jax.block_until_ready(soft_target_cross_entropy_loss(pred, target, "none"))
    ref_none = _reference(pred, target, "none")
    assert loss_none.shape == (batch, seq)
    assert loss_none.dtype == jnp.float32
    assert jnp.allclose(loss_none, ref_none, rtol=1e-5, atol=1e-5)

    # Case 2: non-divisible row count (tail-tile mask) + bf16 inputs
    # (exercises native-dtype DMA, 16-row sublane packing, and on v6e/v7x the
    # bf16 EUP exp path). Output dtype matches the PyTorch promotion (bf16).
    pred2 = jax.random.normal(k3, (3, 5, 32), dtype=jnp.bfloat16)
    target2 = jax.nn.softmax(
        jax.random.normal(k4, (3, 5, 32), dtype=jnp.float32), axis=-1
    ).astype(jnp.bfloat16)
    loss2 = jax.block_until_ready(soft_target_cross_entropy_loss(pred2, target2, "mean"))
    ref2 = _reference(pred2, target2, "mean")
    assert loss2.dtype == jnp.bfloat16
    assert jnp.allclose(jnp.float32(loss2), ref2, rtol=2e-2, atol=2e-2), (loss2, ref2)

    print("KERNEL_OK")
</pallas_src>

<mosaic_0001>
module attributes {stable_mosaic.version = 11 : i64} {
  func.func @_soft_ce_kernel(%arg0: i32, %arg1: memref<8x32xf32, #tpu.memory_space<vmem>>, %arg2: memref<8x32xf32, #tpu.memory_space<vmem>>, %arg3: memref<8x1xf32, #tpu.memory_space<vmem>>) attributes {dimension_semantics = [#tpu.dimension_semantics<parallel>], iteration_bounds = array<i64: 2>, scalar_prefetch = 0 : i64, scratch_operands = 0 : i64, tpu.core_type = #tpu.core_type<tc>, window_params = [{transform_indices = @transform_0, window_bounds = array<i64: 8, 32>}, {transform_indices = @transform_1, window_bounds = array<i64: 8, 32>}, {transform_indices = @transform_2, window_bounds = array<i64: 8, 1>}]} {
    %c0 = arith.constant 0 : index
    %c0_0 = arith.constant 0 : index
    %0 = vector.load %arg1[%c0, %c0_0] : memref<8x32xf32, #tpu.memory_space<vmem>>, vector<8x32xf32>
    %c0_1 = arith.constant 0 : index
    %c0_2 = arith.constant 0 : index
    %1 = vector.load %arg2[%c0_1, %c0_2] : memref<8x32xf32, #tpu.memory_space<vmem>>, vector<8x32xf32>
    %cst = arith.constant dense<0xFF800000> : vector<8xf32>
    %2 = vector.multi_reduction <maximumf>, %0, %cst [1] : vector<8x32xf32> to vector<8xf32>
    %3 = vector.shape_cast %2 : vector<8xf32> to vector<8x1xf32>
    %4 = vector.broadcast %3 : vector<8x1xf32> to vector<8x32xf32>
    %5 = arith.subf %0, %4 : vector<8x32xf32>
    %6 = math.exp %5 : vector<8x32xf32>
    %cst_3 = arith.constant dense<0.000000e+00> : vector<8xf32>
    %7 = vector.multi_reduction <add>, %6, %cst_3 [1] : vector<8x32xf32> to vector<8xf32>
    %8 = vector.shape_cast %7 : vector<8xf32> to vector<8x1xf32>
    %9 = math.log %8 : vector<8x1xf32>
    %cst_4 = arith.constant dense<0.000000e+00> : vector<8xf32>
    %10 = vector.multi_reduction <add>, %1, %cst_4 [1] : vector<8x32xf32> to vector<8xf32>
    %11 = vector.shape_cast %10 : vector<8xf32> to vector<8x1xf32>
    %12 = arith.mulf %1, %0 : vector<8x32xf32>
    %cst_5 = arith.constant dense<0.000000e+00> : vector<8xf32>
    %13 = vector.multi_reduction <add>, %12, %cst_5 [1] : vector<8x32xf32> to vector<8xf32>
    %14 = vector.shape_cast %13 : vector<8xf32> to vector<8x1xf32>
    %15 = arith.addf %3, %9 : vector<8x1xf32>
    %16 = arith.mulf %15, %11 : vector<8x1xf32>
    %17 = arith.subf %16, %14 : vector<8x1xf32>
    %c8_i32 = arith.constant 8 : i32
    %18 = arith.muli %arg0, %c8_i32 : i32
    %19 = tpu.iota {dimensions = array<i32: 0>} : vector<8x1xi32>
    %20 = vector.broadcast %18 : i32 to vector<8x1xi32>
    %21 = arith.addi %20, %19 : vector<8x1xi32>
    %c16_i32 = arith.constant 16 : i32
    %22 = vector.broadcast %c16_i32 : i32 to vector<8x1xi32>
    %23 = arith.cmpi slt, %21, %22 : vector<8x1xi32>
    %cst_6 = arith.constant 0.000000e+00 : f32
    %24 = vector.broadcast %cst_6 : f32 to vector<8x1xf32>
    %25 = arith.select %23, %17, %24 : vector<8x1xi1>, vector<8x1xf32>
    %c0_7 = arith.constant 0 : index
    %c0_8 = arith.constant 0 : index
    %26 = vector.load %arg3[%c0_7, %c0_8] : memref<8x1xf32, #tpu.memory_space<vmem>>, vector<8x1xf32>
    tpu.vector_store %arg3[%c0_7, %c0_8], %25 {strides = array<i32>} : memref<8x1xf32, #tpu.memory_space<vmem>>, vector<8x1xf32>,
    return
  }
  func.func @transform_0(%arg0: i32) -> (i32, i32) {
    %c0_i32 = arith.constant 0 : i32
    %c0_i32_0 = arith.constant 0 : i32
    return %arg0, %c0_i32 : i32, i32
  }
  func.func @transform_1(%arg0: i32) -> (i32, i32) {
    %c0_i32 = arith.constant 0 : i32
    %c0_i32_0 = arith.constant 0 : i32
    return %arg0, %c0_i32 : i32, i32
  }
  func.func @transform_2(%arg0: i32) -> (i32, i32) {
    %c0_i32 = arith.constant 0 : i32
    %c0_i32_0 = arith.constant 0 : i32
    return %arg0, %c0_i32 : i32, i32
  }
}

</mosaic_0001>

<llo_original>
// kernel: tpu_custom_call.1
$region0: #{tpu_custom_call.1}
  #allocation0 [shape = 'u32[]', space=smem, size = 0x4, offset = 0x4, fixed_abs, tag = 'smem constant byte address 0x4 - core index']
  #allocation1 [shape = 'u32[144,128]{1,0:T(1,128)}', space=vmem, size = 0x12000, scoped, tag = 'internal scratch']
  %s0 = inlined_call_operand.hbm [shape: f32[16,32], index: 0, kind: input, shape index: {}]
  %s1 = inlined_call_operand.hbm [shape: f32[16,32], index: 1, kind: input, shape index: {}]
  %s2 = inlined_call_operand.vmem [shape: f32[16,1], index: 2, kind: output, shape index: {}]
  %s3 = sld [smem:[#allocation0]]
  $region49: #{tpu_custom_call.1} parent=0
    _
  %s5 = ssub.s32 1, %s3
  %s6 = scalar_select 0, %s5, %s3
  $region1: #{tpu_custom_call.1} parent=0
    #allocation2 [shape = 'u8[8192]{0}', space=vmem, size = 0x2000, scoped, tag = 'input window, operand 0']
    #allocation3 [shape = 's32[2]{0}', space=sflag, size = 0x8, scoped, tag = 'scoped memory for tpu_custom_call.1']
    #allocation4 [shape = 'u8[8192]{0}', space=vmem, size = 0x2000, scoped, tag = 'input window, operand 1']
    #allocation5 [shape = 's32[2]{0}', space=sflag, size = 0x8, scoped, tag = 'scoped memory for tpu_custom_call.1']
    %7 = vsyncpa [#allocation3], 0
    %s8 = scalar_lea.sflag [#allocation3], 1
    %9 = vsyncpa %s8, 0
    %10 = vsyncpa [#allocation5], 0
    %s11 = scalar_lea.sflag [#allocation5], 1
    %12 = vsyncpa %s11, 0
    loop: start=0, step=1, limit=4
    $region2: #{tpu_custom_call.1} parent=1 // loop_pre_header
      _
    $region3: #{tpu_custom_call.1} parent=1 // loop_header
      %s14 = sphi 0, %s18
      %p15 = scmp.ge.s32.totalorder %s14, 4
      %s24 = sphi 0, %s26
      %s27 = sphi 0, %s24
      %s28 = sphi 0, %s27
      %s44 = sphi 0, %s28
      %s50 = sphi 0, %s52
      %s53 = sphi 0, %s50
      %s54 = sphi 0, %s53
      %s70 = sphi 0, %s54
      %s76 = sphi 0, %s78
      %s79 = sphi 0, %s76
      %s80 = sphi 0, %s79
      %s96 = sphi 0, %s80
    $region4: #{tpu_custom_call.1} parent=1 // loop_header_branch
      %17 = sbr.rel (%p15) target = $region8
    $region5: #{tpu_custom_call.1} parent=1 // loop_body
      %s19 = ssub.s32 %s14, 1
      %s20 = ssub.s32 %s14, 2
      %s21 = sadd.s32 %s14, 1
      %s22 = ssub.s32 %s14, %s21
      %p23 = scmp.eq.s32.totalorder %s22, 0
      %s25 = sadd.s32 %s24, 1
      %s26 = scalar_select %p23, %s24, %s25
      %p29 = pneg %p23
      %p30 = scmp.eq.s32.totalorder %s14, 1
      %p31 = por %p29, %p30
      %p32 = scmp.ne.s32.totalorder %s24, %s27
      %p33 = scmp.eq.s32.totalorder %s14, 0
      %p34 = por %p32, %p33
      %p35 = scmp.ne.s32.totalorder %s24, %s27
      %p36 = scmp.eq.s32.totalorder %s19, 1
      %p37 = por %p35, %p36
      %p38 = scmp.ne.s32.totalorder %s27, %s28
      %p39 = scmp.eq.s32.totalorder %s19, 0
      %p40 = por %p38, %p39
      %p41 = scmp.ne.s32.totalorder %s27, %s28
      %p42 = scmp.eq.s32.totalorder %s20, 1
      %p43 = por %p41, %p42
      %p45 = scmp.ne.s32.totalorder %s28, %s44
      %p46 = scmp.eq.s32.totalorder %s20, 0
      %p47 = por %p45, %p46
      %s48 = ssub.s32 %s14, %s21
      %p49 = scmp.eq.s32.totalorder %s48, 0
      %s51 = sadd.s32 %s50, 1
      %s52 = scalar_select %p49, %s50, %s51
      %p55 = pneg %p49
      %p56 = scmp.eq.s32.totalorder %s14, 1
      %p57 = por %p55, %p56
      %p58 = scmp.ne.s32.totalorder %s50, %s53
      %p59 = scmp.eq.s32.totalorder %s14, 0
      %p60 = por %p58, %p59
      %p61 = scmp.ne.s32.totalorder %s50, %s53
      %p62 = scmp.eq.s32.totalorder %s19, 1
      %p63 = por %p61, %p62
      %p64 = scmp.ne.s32.totalorder %s53, %s54
      %p65 = scmp.eq.s32.totalorder %s19, 0
      %p66 = por %p64, %p65
      %p67 = scmp.ne.s32.totalorder %s53, %s54
      %p68 = scmp.eq.s32.totalorder %s20, 1
      %p69 = por %p67, %p68
      %p71 = scmp.ne.s32.totalorder %s54, %s70
      %p72 = scmp.eq.s32.totalorder %s20, 0
      %p73 = por %p71, %p72
      %s74 = ssub.s32 %s14, %s21
      %p75 = scmp.eq.s32.totalorder %s74, 0
      %s77 = sadd.s32 %s76, 1
      %s78 = scalar_select %p75, %s76, %s77
      %p81 = pneg %p75
      %p82 = scmp.eq.s32.totalorder %s14, 1
      %p83 = por %p81, %p82
      %p84 = scmp.ne.s32.totalorder %s76, %s79
      %p85 = scmp.eq.s32.totalorder %s14, 0
      %p86 = por %p84, %p85
      %p87 = scmp.ne.s32.totalorder %s76, %s79
      %p88 = scmp.eq.s32.totalorder %s19, 1
      %p89 = por %p87, %p88
      %p90 = scmp.ne.s32.totalorder %s79, %s80
      %p91 = scmp.eq.s32.totalorder %s19, 0
      %p92 = por %p90, %p91
      %p93 = scmp.ne.s32.totalorder %s79, %s80
      %p94 = scmp.eq.s32.totalorder %s20, 1
      %p95 = por %p93, %p94
      %p97 = scmp.ne.s32.totalorder %s80, %s96
      %p98 = scmp.eq.s32.totalorder %s20, 0
      %p99 = por %p97, %p98
      %p100 = scmp.le.s32.totalorder 1, %s14
      %p101 = scmp.lt.s32.totalorder %s14, 3
      %p102 = pnand %p100, %p101
      %p103 = pneg %p102
      // Predicated region
      $region9: #{tpu_custom_call.1} parent=5 // pred_check
        _
      $region10: #{tpu_custom_call.1} parent=5 // pred_check_branch
        %105 = sbr.rel (%p102) target = $region12
      $region11: #{tpu_custom_call.1} parent=5 // pred_region
        %s106 = ssub.s32 %s14, 1
      $region12: #{tpu_custom_call.1} parent=5 // pred_fallthru
        _
      %p107 = scmp.lt.s32.totalorder %s14, 2
      // Predicated region
      $region13: #{tpu_custom_call.1} parent=5 // pred_check
        %p108 = pneg %p107
      $region14: #{tpu_custom_call.1} parent=5 // pred_check_branch
        %110 = sbr.rel (%p108) target = $region16
      $region15: #{tpu_custom_call.1} parent=5 // pred_region
        // Predicated region
        $region17: #{tpu_custom_call.1} parent=15 // pred_check
          %p111 = pneg %p34
        $region18: #{tpu_custom_call.1} parent=15 // pred_check_branch
          %113 = sbr.rel (%p111) target = $region20
        $region19: #{tpu_custom_call.1} parent=15 // pred_region
          %s114 = sand.u32 %s24, 1
          %s115 = scalar_lea.sflag [#allocation3], %s114
          %s116 = sand.u32 %s24, 1
          %s117 = smul.addr %s116, 8
          %s118 = scalar_lea.vmem [#allocation2], %s117
          %s120 = ssub.s32 128, 128
          %121 = vsyncadd %s115, %s120
          %s122 = smul.addr %s14, 128
          %s123 = scalar_lea.hbm %s0, %s122
          %s125 = sshll.u32 %s118, 4
          %s126 = int_to_ptr.vmem [resolvable:$true] %s125
          %128 = dma.hbm_to_vmem [thread:$0]  %s123, 128, %s126, %s115
        $region20: #{tpu_custom_call.1} parent=15 // pred_fallthru
          _
        // Predicated region
        $region21: #{tpu_custom_call.1} parent=15 // pred_check
          %p129 = pneg %p60
        $region22: #{tpu_custom_call.1} parent=15 // pred_check_branch
          %131 = sbr.rel (%p129) target = $region24
        $region23: #{tpu_custom_call.1} parent=15 // pred_region
          %s132 = sand.u32 %s50, 1
          %s133 = scalar_lea.sflag [#allocation5], %s132
          %s134 = sand.u32 %s50, 1
          %s135 = smul.addr %s134, 8
          %s136 = scalar_lea.vmem [#allocation4], %s135
          %s138 = ssub.s32 128, 128
          %139 = vsyncadd %s133, %s138
          %s140 = smul.addr %s14, 128
          %s141 = scalar_lea.hbm %s1, %s140
          %s143 = sshll.u32 %s136, 4
          %s144 = int_to_ptr.vmem [resolvable:$true] %s143
          %146 = dma.hbm_to_vmem [thread:$0]  %s141, 128, %s144, %s133
        $region24: #{tpu_custom_call.1} parent=15 // pred_fallthru
          _
      $region16: #{tpu_custom_call.1} parent=5 // pred_fallthru
        _
      %p147 = scmp.le.s32.totalorder 1, %s14
      %p148 = scmp.lt.s32.totalorder %s14, 3
      %p149 = pnand %p147, %p148
      %p150 = pneg %p149
      // Predicated region
      $region25: #{tpu_custom_call.1} parent=5 // pred_check
        _
      $region26: #{tpu_custom_call.1} parent=5 // pred_check_branch
        %152 = sbr.rel (%p149) target = $region28
      $region27: #{tpu_custom_call.1} parent=5 // pred_region
        %s153 = ssub.s32 %s14, 1
        %s154 = sand.u32 %s27, 1
        %s155 = scalar_lea.sflag [#allocation3], %s154
        %s156 = sand.u32 %s27, 1
        %s157 = smul.addr %s156, 8
        %s158 = scalar_lea.vmem [#allocation2], %s157
        // Predicated region
        $region29: #{tpu_custom_call.1} parent=27 // pred_check
          %p159 = pneg %p40
        $region30: #{tpu_custom_call.1} parent=27 // pred_check_branch
          %161 = sbr.rel (%p159) target = $region32
        $region31: #{tpu_custom_call.1} parent=27 // pred_region
          %162 = dma.done %s155, 128
        $region32: #{tpu_custom_call.1} parent=27 // pred_fallthru
          _
        %s163 = sand.u32 %s53, 1
        %s164 = scalar_lea.sflag [#allocation5], %s163
        %s165 = sand.u32 %s53, 1
        %s166 = smul.addr %s165, 8
        %s167 = scalar_lea.vmem [#allocation4], %s166
        // Predicated region
        $region33: #{tpu_custom_call.1} parent=27 // pred_check
          %p168 = pneg %p66
        $region34: #{tpu_custom_call.1} parent=27 // pred_check_branch
          %170 = sbr.rel (%p168) target = $region36
        $region35: #{tpu_custom_call.1} parent=27 // pred_region
          %171 = dma.done %s164, 128
        $region36: #{tpu_custom_call.1} parent=27 // pred_fallthru
          _
        %s172 = sand.u32 %s27, 1
        %s173 = scalar_lea.sflag [#allocation3], %s172
        %s174 = sand.u32 %s27, 1
        %s175 = smul.addr %s174, 8
        %s176 = scalar_lea.vmem [#allocation2], %s175
        %p177 = pneg %p40
        %p178 = pneg %p37
        %s179 = sand.u32 %s53, 1
        %s180 = scalar_lea.sflag [#allocation5], %s179
        %s181 = sand.u32 %s53, 1
        %s182 = smul.addr %s181, 8
        %s183 = scalar_lea.vmem [#allocation4], %s182
        %p184 = pneg %p66
        %p185 = pneg %p63
        %p186 = pneg %p92
        %p187 = pneg %p89
        %p188 = scmp.lt.s32.totalorder %s19, 1
        %s189 = scalar_select %p188, %s19, 1
        %s190 = smul.addr %s189, 8
        %s191 = scalar_lea.vmem %s2, %s190
        %p192 = scmp.lt.s32.totalorder %s19, 1
        %s193 = scalar_select %p192, %s19, 1
        %s194 = smul.addr %s193, 8
        %s195 = scalar_lea.vmem %s2, %s194
        %v196 = vld [vmem:[%s158] sm:$0xff]
        %v197 = vld [vmem:[%s167] sm:$0xff]
        %vm198 = vcmask 261120
        %v199 = vsel %vm198, %v196, -inf
        %200 = vmax.xlane.f32.xlu0 %v199
        %v201 = vpop.xlane.xlu0 %200
        %v202 = vsub.f32 %v196, %v201
        %v203 = vmul.f32 %v202, 1.442695
        %v204 = vpow.pop %v203
        %v205 = vsel %vm198, %v204, 0.0
        %206 = vadd.xlane.f32.xlu0 %v205
        %v207 = vpop.xlane.xlu0 %206
        %v208 = vlog2.pop %v207
        %v209 = vmul.f32 %v208, 0.6931472
        %v210 = vsel %vm198, %v197, 0.0
        %211 = vadd.xlane.f32.xlu0 %v210
        %v212 = vpop.xlane.xlu0 %211
        %v213 = vmul.f32 %v197, %v196
        %v214 = vsel %vm198, %v213, 0.0
        %215 = vadd.xlane.f32.xlu0 %v214
        %v216 = vpop.xlane.xlu0 %215
        %v217 = vadd.f32 %v201, %v209
        %v218 = vmul.f32 %v217, %v212
        %v219 = vsub.f32 %v218, %v216
        %s220 = smul.u32 %s19, 8
        %v221 = vlaneseq
        %v222 = vshrl.u32 %v221, 7
        %v223 = vstv %s220
        %v224 = vadd.s32 %v223, %v222
        %vm225 = vcmp.lt.s32.totalorder %v224, 16
        %v226 = vsel %vm225, %v219, 0.0
        %vm227 = vcmask 7168
        %228 = vst.msk [vmem:[%s195] sm:$0xff] %vm227, %v226
        %p229 = scmp.lt.s32.totalorder %s19, 1
        %s230 = scalar_select %p229, %s19, 1
        %s231 = smul.addr %s230, 8
        %s232 = scalar_lea.vmem %s2, %s231
        // Predicated region
        $region37: #{tpu_custom_call.1} parent=27 // pred_check
          %p233 = pneg %p89
        $region38: #{tpu_custom_call.1} parent=27 // pred_check_branch
          %235 = sbr.rel (%p233) target = $region40
        $region39: #{tpu_custom_call.1} parent=27 // pred_region
          _
        $region40: #{tpu_custom_call.1} parent=27 // pred_fallthru
          _
      $region28: #{tpu_custom_call.1} parent=5 // pred_fallthru
        _
      %p236 = scmp.le.s32.totalorder 2, %s14
      // Predicated region
      $region41: #{tpu_custom_call.1} parent=5 // pred_check
        %p237 = pneg %p236
      $region42: #{tpu_custom_call.1} parent=5 // pred_check_branch
        %239 = sbr.rel (%p237) target = $region44
      $region43: #{tpu_custom_call.1} parent=5 // pred_region
        %s240 = ssub.s32 %s14, 2
        // Predicated region
        $region45: #{tpu_custom_call.1} parent=43 // pred_check
          %p241 = pneg %p95
        $region46: #{tpu_custom_call.1} parent=43 // pred_check_branch
          %243 = sbr.rel (%p241) target = $region48
        $region47: #{tpu_custom_call.1} parent=43 // pred_region
          %p244 = scmp.lt.s32.totalorder %s20, 1
          %s245 = scalar_select %p244, %s20, 1
          %s246 = smul.addr %s245, 8
          %s247 = scalar_lea.vmem %s2, %s246
        $region48: #{tpu_custom_call.1} parent=43 // pred_fallthru
          _
      $region44: #{tpu_custom_call.1} parent=5 // pred_fallthru
        _
    $region6: #{tpu_custom_call.1} parent=1 // loop_footer
      %s18 = sadd.s32 1, %s14
    $region7: #{tpu_custom_call.1} parent=1 // loop_footer_branch
      %13 = sbr.rel target = $region3
    $region8: #{tpu_custom_call.1} parent=1 // loop_exit
      _
    %248 = vsyncpa [#allocation3], 1
    %s249 = scalar_lea.sflag [#allocation3], 1
    %250 = vsyncpa %s249, 1
    %251 = vsyncpa [#allocation5], 1
    %s252 = scalar_lea.sflag [#allocation5], 1
    %253 = vsyncpa %s252, 1

</llo_original>
